<compile_context>
chip_gen: v7x
topology: tpu7x:2x2x1
jax: 0.10.0
libtpu: 0.0.40
codegen_flags: <defaults>
</compile_context>

<pallas_src>
import functools

import jax
import jax.numpy as jnp
from jax import lax
from jax.experimental import pallas as pl
from jax.experimental.pallas import tpu as pltpu


def _router_kernel(x_ref, w_ref, b_ref,
                   logits_ref, weights_ref, sel_ref, onehot_ref,
                   *, top_k: int, expert_number: int):
    x = x_ref[...]                        # (TM, H) current token tile (native dtype)
    w = w_ref[...]                        # (E, H)  resident gate weight (torch layout)
    b = b_ref[...]                        # (E, 1)  resident gate bias

    E = expert_number
    TM = x.shape[0]

    # Gate, lane-dense: logits^T = W @ x^T -> (E, TM), f32 accumulation on the MXU.
    lt = jnp.einsum("eh,th->et", w, x, preferred_element_type=jnp.float32)
    lt = lt + b.astype(jnp.float32)
    logits_ref[...] = lt.astype(logits_ref.dtype)          # (E, TM) lane-dense store

    e_iota = lax.broadcasted_iota(jnp.int32, (E, TM), 0)   # expert id per sublane row

    # Iterative top-k directly on the raw logits (no full softmax needed — softmax
    # is strictly monotone per token).  First-occurrence tie-break matches topk.
    work = lt
    top_vals, top_idxs = [], []
    for _ in range(top_k):
        vmax = jnp.max(work, axis=0, keepdims=True)                          # (1, TM)
        idx = jnp.min(jnp.where(work == vmax, e_iota, E), axis=0, keepdims=True)
        top_vals.append(vmax)
        top_idxs.append(idx)
        work = jnp.where(e_iota == idx, -jnp.inf, work)

    tv = jnp.concatenate(top_vals, axis=0)                  # (K, TM) f32, row 0 = max
    sel = jnp.concatenate(top_idxs, axis=0)                 # (K, TM) int32

    # router_weights = softmax over the K selected logits
    #   == torch's softmax(all experts) gathered at top-k and renormalized.
    # Single exact normalization on the tiny (K, TM) slab (no approx reciprocal).
    etv = jnp.exp(tv - tv[0:1, :])                          # <= 1, no overflow
    norm = etv / jnp.sum(etv, axis=0, keepdims=True)
    weights_ref[...] = norm.astype(weights_ref.dtype)       # (K, TM) lane-dense
    sel_ref[...] = sel                                      # (K, TM) lane-dense

    # expert_mask directly in (E, K, TM) layout, int8, one full contiguous block
    # store.  The transient (E, K, TM) int32 iota/compare is accounted for in the
    # wrapper's VMEM budget when picking tm (kept over per-k sliced int8 stores for
    # lowering robustness of packed-dtype sub-block writes).
    oh_iota = lax.broadcasted_iota(jnp.int32, (E, top_k, TM), 0)
    onehot_ref[...] = (oh_iota == sel[None, :, :]).astype(onehot_ref.dtype)


def _vmem_capacity_bytes() -> int:
    """Per-TensorCore VMEM; conservative (v7x) fallback if the query is unavailable."""
    try:
        cap = getattr(pltpu.get_tpu_info(), "vmem_capacity_bytes", None)
        if cap:
            return int(cap)
    except Exception:
        pass
    return 64 * 1024 * 1024


def _pick_token_tile(T, H, E, K, x_bytes):
    """Largest token tile (multiple of 128, <=1024) fitting the per-chip VMEM budget."""
    vmem_cap = _vmem_capacity_bytes()
    vmem_limit = min(int(vmem_cap * 0.85), 100 * 1024 * 1024)
    budget = int(vmem_limit * 0.70)                 # headroom for Mosaic internal scratch
    fixed = 2 * H * E * x_bytes + 1024              # resident gate weight (+bias)
    per_token = (
        2 * H * x_bytes                             # double-buffered hidden-state tile
        + 2 * E * x_bytes                           # logits output block
        + 2 * K * (x_bytes + 4)                     # router_weights + selected_experts
        + 2 * E * K                                 # int8 expert_mask block
        + 16 * E + 10 * E * K + 16 * K + 64         # f32/int32 in-kernel intermediates
    )
    tm = (budget - fixed) // per_token
    tm = max(128, min(1024, (tm // 128) * 128))
    if tm >= T:
        tm = T                                      # single full-extent block
    return int(tm), int(vmem_limit)


def moe_router(hidden_states, gate_weight, gate_bias, top_k, *, tm=None):
    """hidden_states: (T, H); gate_weight: (E, H) torch nn.Linear layout; gate_bias: (E,).

    hidden_states is consumed in its native dtype (bf16 stays bf16 into the MXU with
    f32 accumulation) — never upcast it before calling this function.
    """
    T, H = hidden_states.shape
    E = gate_weight.shape[0]
    x_bytes = jnp.dtype(hidden_states.dtype).itemsize

    auto_tm, vmem_limit = _pick_token_tile(T, H, E, top_k, x_bytes)
    if tm is None:
        tm = auto_tm
    else:
        tm = min(int(tm), T)
        if tm < T:                                  # partial tiling needs lane-aligned tm
            tm = max(128, (tm // 128) * 128)
        if tm >= T:
            tm = T

    num_tiles = pl.cdiv(T, tm)                      # ragged last block handled by Pallas
    gate_b = gate_bias.reshape(E, 1)

    out_shape = (
        jax.ShapeDtypeStruct((E, T), hidden_states.dtype),       # logits^T (lane-dense)
        jax.ShapeDtypeStruct((top_k, T), hidden_states.dtype),   # router_weights^T
        jax.ShapeDtypeStruct((top_k, T), jnp.int32),             # selected_experts^T
        jax.ShapeDtypeStruct((E, top_k, T), jnp.int8),           # expert_mask (E, K, T)
    )

    kernel = functools.partial(_router_kernel, top_k=top_k, expert_number=E)
    logits_et, weights_kt, sel_kt, expert_mask = pl.pallas_call(
        kernel,
        out_shape=out_shape,
        grid=(num_tiles,),
        in_specs=[
            pl.BlockSpec((tm, H), lambda i: (i, 0)),     # token tile (dominant HBM read)
            pl.BlockSpec((E, H), lambda i: (0, 0)),      # resident gate weight
            pl.BlockSpec((E, 1), lambda i: (0, 0)),      # resident gate bias
        ],
        out_specs=(
            pl.BlockSpec((E, tm), lambda i: (0, i)),
            pl.BlockSpec((top_k, tm), lambda i: (0, i)),
            pl.BlockSpec((top_k, tm), lambda i: (0, i)),
            pl.BlockSpec((E, top_k, tm), lambda i: (0, 0, i)),
        ),
        compiler_params=pltpu.CompilerParams(
            dimension_semantics=("parallel",),           # independent token tiles (shards across TCs on v7x)
            vmem_limit_bytes=vmem_limit,
        ),
    )(hidden_states, gate_weight, gate_b)

    # Tiny layout fixes to present torch-shaped outputs (all O(T*E) / O(T*K)).
    router_logits = jnp.transpose(logits_et)             # (T, E)
    router_weights = jnp.transpose(weights_kt)           # (T, K)
    selected_experts = jnp.transpose(sel_kt)             # (T, K) int32 (torch: int64)
    return router_logits, router_weights, selected_experts, expert_mask


def _reference(hidden_states, gate_weight, gate_bias, top_k):
    """Pure-JAX reference mirroring the torch module."""
    logits = hidden_states @ gate_weight.T + gate_bias
    probs = jax.nn.softmax(logits.astype(jnp.float32), axis=-1)
    top_v, top_i = lax.top_k(probs, top_k)
    weights = (top_v / jnp.sum(top_v, axis=-1, keepdims=True)).astype(hidden_states.dtype)
    E = gate_weight.shape[0]
    mask = jax.nn.one_hot(top_i, E, dtype=jnp.int32)      # (T, K, E)
    mask = jnp.transpose(mask, (2, 1, 0))                 # (E, K, T)
    return logits, weights, top_i.astype(jnp.int32), mask


if __name__ == "__main__":
    # small shapes: batch=2, seq=8 -> T=16 tokens; hidden=32; experts=8; top_k=2
    T, H, E, K = 16, 32, 8, 2

    key = jax.random.PRNGKey(0)
    kx, kw, kb = jax.random.split(key, 3)

    hidden_states = jax.random.normal(kx, (T, H), dtype=jnp.float32)
    gate_weight = jax.random.normal(kw, (E, H), dtype=jnp.float32) * (1.0 / jnp.sqrt(H))
    gate_bias = jax.random.normal(kb, (E,), dtype=jnp.float32) * 0.01

    outs = moe_router(hidden_states, gate_weight, gate_bias, K)
    jax.block_until_ready(outs)
    logits, weights, sel, expert_mask = outs

    assert logits.shape == (T, E)
    assert weights.shape == (T, K)
    assert sel.shape == (T, K)
    assert expert_mask.shape == (E, K, T)

    r_logits, r_weights, r_sel, r_mask = _reference(hidden_states, gate_weight, gate_bias, K)
    assert jnp.allclose(logits, r_logits, rtol=1e-4, atol=1e-4)
    assert jnp.allclose(weights, r_weights, rtol=1e-3, atol=1e-4)
    assert jnp.array_equal(sel, r_sel)
    assert jnp.array_equal(expert_mask.astype(jnp.int32), r_mask)

    print("KERNEL_OK")
</pallas_src>

<mosaic_0001>
module attributes {stable_mosaic.version = 11 : i64} {
  func.func @_router_kernel(%arg0: i32, %arg1: memref<16x32xf32, #tpu.memory_space<vmem>>, %arg2: memref<8x32xf32, #tpu.memory_space<vmem>>, %arg3: memref<8x1xf32, #tpu.memory_space<vmem>>, %arg4: memref<8x16xf32, #tpu.memory_space<vmem>>, %arg5: memref<2x16xf32, #tpu.memory_space<vmem>>, %arg6: memref<2x16xi32, #tpu.memory_space<vmem>>, %arg7: memref<8x2x16xi8, #tpu.memory_space<vmem>>) attributes {dimension_semantics = [#tpu.dimension_semantics<parallel>], iteration_bounds = array<i64: 1>, scalar_prefetch = 0 : i64, scratch_operands = 0 : i64, tpu.core_type = #tpu.core_type<tc>, window_params = [{transform_indices = @transform_0, window_bounds = array<i64: 16, 32>}, {pipeline_mode = #tpu.pipeline_mode<synchronous>, transform_indices = @transform_1, window_bounds = array<i64: 8, 32>}, {pipeline_mode = #tpu.pipeline_mode<synchronous>, transform_indices = @transform_2, window_bounds = array<i64: 8, 1>}, {transform_indices = @transform_3, window_bounds = array<i64: 8, 16>}, {transform_indices = @transform_4, window_bounds = array<i64: 2, 16>}, {transform_indices = @transform_5, window_bounds = array<i64: 2, 16>}, {transform_indices = @transform_6, window_bounds = array<i64: 8, 2, 16>}]} {
    %c0 = arith.constant 0 : index
    %c0_0 = arith.constant 0 : index
    %0 = vector.load %arg1[%c0, %c0_0] : memref<16x32xf32, #tpu.memory_space<vmem>>, vector<16x32xf32>
    %c0_1 = arith.constant 0 : index
    %c0_2 = arith.constant 0 : index
    %1 = vector.load %arg2[%c0_1, %c0_2] : memref<8x32xf32, #tpu.memory_space<vmem>>, vector<8x32xf32>
    %c0_3 = arith.constant 0 : index
    %c0_4 = arith.constant 0 : index
    %2 = vector.load %arg3[%c0_3, %c0_4] : memref<8x1xf32, #tpu.memory_space<vmem>>, vector<8x1xf32>
    "tpu.trace_start"() <{level = 10 : i32, message = "eh,th->et"}> : () -> ()
    %cst = arith.constant dense<0.000000e+00> : vector<8x16xf32>
    %3 = tpu.matmul %1, %0, %cst {dimension_numbers = #tpu.dot_dimension_numbers<[1], [1], [0], [0], [0, 0, 1, 0], [], []>} : vector<8x32xf32>, vector<16x32xf32>, vector<8x16xf32> -> vector<8x16xf32>
    "tpu.trace_stop"() : () -> ()
    %4 = vector.broadcast %2 : vector<8x1xf32> to vector<8x16xf32>
    %5 = arith.addf %3, %4 : vector<8x16xf32>
    %c0_5 = arith.constant 0 : index
    %c0_6 = arith.constant 0 : index
    %6 = vector.load %arg4[%c0_5, %c0_6] : memref<8x16xf32, #tpu.memory_space<vmem>>, vector<8x16xf32>
    tpu.vector_store %arg4[%c0_5, %c0_6], %5 {strides = array<i32>} : memref<8x16xf32, #tpu.memory_space<vmem>>, vector<8x16xf32>,
    %7 = tpu.iota {dimensions = array<i32: 0>} : vector<8x16xi32>
    %cst_7 = arith.constant dense<0xFF800000> : vector<16xf32>
    %8 = vector.multi_reduction <maximumf>, %5, %cst_7 [0] : vector<8x16xf32> to vector<16xf32>
    %9 = vector.shape_cast %8 : vector<16xf32> to vector<1x16xf32>
    %10 = vector.broadcast %9 : vector<1x16xf32> to vector<8x16xf32>
    %11 = arith.cmpf oeq, %5, %10 : vector<8x16xf32>
    %c8_i32 = arith.constant 8 : i32
    %12 = vector.broadcast %c8_i32 : i32 to vector<8x16xi32>
    %13 = arith.select %11, %7, %12 : vector<8x16xi1>, vector<8x16xi32>
    %cst_8 = arith.constant dense<2147483647> : vector<16xi32>
    %14 = vector.multi_reduction <minsi>, %13, %cst_8 [0] : vector<8x16xi32> to vector<16xi32>
    %15 = vector.shape_cast %14 : vector<16xi32> to vector<1x16xi32>
    %16 = vector.broadcast %15 : vector<1x16xi32> to vector<8x16xi32>
    %17 = arith.cmpi eq, %7, %16 : vector<8x16xi32>
    %cst_9 = arith.constant 0xFF800000 : f32
    %18 = vector.broadcast %cst_9 : f32 to vector<8x16xf32>
    %19 = arith.select %17, %18, %5 : vector<8x16xi1>, vector<8x16xf32>
    %cst_10 = arith.constant dense<0xFF800000> : vector<16xf32>
    %20 = vector.multi_reduction <maximumf>, %19, %cst_10 [0] : vector<8x16xf32> to vector<16xf32>
    %21 = vector.shape_cast %20 : vector<16xf32> to vector<1x16xf32>
    %22 = vector.broadcast %21 : vector<1x16xf32> to vector<8x16xf32>
    %23 = arith.cmpf oeq, %19, %22 : vector<8x16xf32>
    %c8_i32_11 = arith.constant 8 : i32
    %24 = vector.broadcast %c8_i32_11 : i32 to vector<8x16xi32>
    %25 = arith.select %23, %7, %24 : vector<8x16xi1>, vector<8x16xi32>
    %cst_12 = arith.constant dense<2147483647> : vector<16xi32>
    %26 = vector.multi_reduction <minsi>, %25, %cst_12 [0] : vector<8x16xi32> to vector<16xi32>
    %27 = vector.shape_cast %26 : vector<16xi32> to vector<1x16xi32>
    %28 = tpu.concatenate %9, %21 in 0 : vector<1x16xf32>, vector<1x16xf32> -> vector<2x16xf32>
    %29 = tpu.concatenate %15, %27 in 0 : vector<1x16xi32>, vector<1x16xi32> -> vector<2x16xi32>
    %30 = vector.extract_strided_slice %28 {offsets = [0, 0], sizes = [1, 16], strides = [1, 1]} : vector<2x16xf32> to vector<1x16xf32>
    %31 = vector.broadcast %30 : vector<1x16xf32> to vector<2x16xf32>
    %32 = arith.subf %28, %31 : vector<2x16xf32>
    %33 = math.exp %32 : vector<2x16xf32>
    %cst_13 = arith.constant dense<0.000000e+00> : vector<16xf32>
    %34 = vector.multi_reduction <add>, %33, %cst_13 [0] : vector<2x16xf32> to vector<16xf32>
    %35 = vector.shape_cast %34 : vector<16xf32> to vector<1x16xf32>
    %36 = vector.broadcast %35 : vector<1x16xf32> to vector<2x16xf32>
    %37 = arith.divf %33, %36 : vector<2x16xf32>
    %c0_14 = arith.constant 0 : index
    %c0_15 = arith.constant 0 : index
    %38 = vector.load %arg5[%c0_14, %c0_15] : memref<2x16xf32, #tpu.memory_space<vmem>>, vector<2x16xf32>
    tpu.vector_store %arg5[%c0_14, %c0_15], %37 {strides = array<i32>} : memref<2x16xf32, #tpu.memory_space<vmem>>, vector<2x16xf32>,
    %c0_16 = arith.constant 0 : index
    %c0_17 = arith.constant 0 : index
    %39 = vector.load %arg6[%c0_16, %c0_17] : memref<2x16xi32, #tpu.memory_space<vmem>>, vector<2x16xi32>
    tpu.vector_store %arg6[%c0_16, %c0_17], %29 {strides = array<i32>} : memref<2x16xi32, #tpu.memory_space<vmem>>, vector<2x16xi32>,
    %40 = tpu.iota {dimensions = array<i32: 0>} : vector<8x2x16xi32>
    %41 = vector.shape_cast %29 : vector<2x16xi32> to vector<1x2x16xi32>
    %42 = vector.broadcast %41 : vector<1x2x16xi32> to vector<8x2x16xi32>
    %43 = arith.cmpi eq, %40, %42 : vector<8x2x16xi32>
    %44 = arith.extui %43 : vector<8x2x16xi1> to vector<8x2x16xi8>
    %c0_18 = arith.constant 0 : index
    %c0_19 = arith.constant 0 : index
    %c0_20 = arith.constant 0 : index
    %45 = vector.load %arg7[%c0_18, %c0_19, %c0_20] : memref<8x2x16xi8, #tpu.memory_space<vmem>>, vector<8x2x16xi8>
    tpu.vector_store %arg7[%c0_18, %c0_19, %c0_20], %44 {strides = array<i32>} : memref<8x2x16xi8, #tpu.memory_space<vmem>>, vector<8x2x16xi8>,
    return
  }
  func.func @transform_0(%arg0: i32) -> (i32, i32) {
    %c0_i32 = arith.constant 0 : i32
    %c0_i32_0 = arith.constant 0 : i32
    return %arg0, %c0_i32 : i32, i32
  }
  func.func @transform_1(%arg0: i32) -> (i32, i32) {
    %c0_i32 = arith.constant 0 : i32
    %c0_i32_0 = arith.constant 0 : i32
    %c0_i32_1 = arith.constant 0 : i32
    return %c0_i32, %c0_i32_0 : i32, i32
  }
  func.func @transform_2(%arg0: i32) -> (i32, i32) {
    %c0_i32 = arith.constant 0 : i32
    %c0_i32_0 = arith.constant 0 : i32
    %c0_i32_1 = arith.constant 0 : i32
    return %c0_i32, %c0_i32_0 : i32, i32
  }
  func.func @transform_3(%arg0: i32) -> (i32, i32) {
    %c0_i32 = arith.constant 0 : i32
    %c0_i32_0 = arith.constant 0 : i32
    return %c0_i32, %arg0 : i32, i32
  }
  func.func @transform_4(%arg0: i32) -> (i32, i32) {
    %c0_i32 = arith.constant 0 : i32
    %c0_i32_0 = arith.constant 0 : i32
    return %c0_i32, %arg0 : i32, i32
  }
  func.func @transform_5(%arg0: i32) -> (i32, i32) {
    %c0_i32 = arith.constant 0 : i32
    %c0_i32_0 = arith.constant 0 : i32
    return %c0_i32, %arg0 : i32, i32
  }
  func.func @transform_6(%arg0: i32) -> (i32, i32, i32) {
    %c0_i32 = arith.constant 0 : i32
    %c0_i32_0 = arith.constant 0 : i32
    %c0_i32_1 = arith.constant 0 : i32
    return %c0_i32, %c0_i32_0, %arg0 : i32, i32, i32
  }
}

</mosaic_0001>

<llo_original>
// kernel: tpu_custom_call.1
$region0: #{tpu_custom_call.1}
  #allocation0 [shape = 'u32[]', space=smem, size = 0x4, offset = 0x4, fixed_abs, tag = 'smem constant byte address 0x4 - core index']
  #allocation1 [shape = 'u32[144,128]{1,0:T(1,128)}', space=vmem, size = 0x12000, scoped, tag = 'internal scratch']
  %s0 = inlined_call_operand.hbm [shape: f32[16,32], index: 0, kind: input, shape index: {}]
  %s1 = inlined_call_operand.vmem [shape: f32[8,32], index: 1, kind: input, shape index: {}]
  %s2 = inlined_call_operand.vmem [shape: f32[8,1], index: 2, kind: input, shape index: {}]
  %s3 = inlined_call_operand.hbm [shape: f32[8,16], index: 3, kind: output, shape index: {0}]
  %s4 = inlined_call_operand.hbm [shape: f32[2,16], index: 4, kind: output, shape index: {1}]
  %s5 = inlined_call_operand.hbm [shape: s32[2,16], index: 5, kind: output, shape index: {2}]
  %s6 = inlined_call_operand.vmem [shape: s8[8,2,16], index: 6, kind: output, shape index: {3}]
  %7 = xla_tuple %s3, %s4, %s5, %s6
  %s8 = sld [smem:[#allocation0]]
  $region50: #{tpu_custom_call.1} parent=0
    _
  %s10 = ssub.s32 1, %s8
  %s11 = scalar_select 0, %s10, %s8
  $region1: #{tpu_custom_call.1} parent=0
    #allocation2 [shape = 'u8[8192]{0}', space=vmem, size = 0x2000, scoped, tag = 'input window, operand 0, single buffered']
    #allocation3 [shape = 's32[1]{0}', space=sflag, size = 0x4, scoped, tag = 'scoped memory for tpu_custom_call.1']
    #allocation4 [shape = 's32[1]{0}', space=sflag, size = 0x4, scoped, tag = 'scoped memory for tpu_custom_call.1']
    #allocation5 [shape = 'u8[4096]{0}', space=vmem, size = 0x1000, scoped, tag = 'output window, operand 0, single buffered']
    #allocation6 [shape = 'u8[1024]{0}', space=vmem, size = 0x400, scoped, tag = 'output window, operand 1, single buffered']
    #allocation7 [shape = 's32[1]{0}', space=sflag, size = 0x4, scoped, tag = 'scoped memory for tpu_custom_call.1']
    #allocation8 [shape = 'u8[1024]{0}', space=vmem, size = 0x400, scoped, tag = 'output window, operand 2, single buffered']
    %12 = vsyncpa [#allocation3], 0
    %13 = vsyncpa [#allocation4], 0
    %14 = vsyncpa [#allocation7], 0
    // Predicated region
    $region2: #{tpu_custom_call.1} parent=1 // pred_check
      _
    $region3: #{tpu_custom_call.1} parent=1 // pred_check_branch
      %16 = sbr.rel (0) target = $region5
    $region4: #{tpu_custom_call.1} parent=1 // pred_region
      %s18 = ssub.s32 256, 256
      %19 = vsyncadd [#allocation3], %s18
      %s20 = sshll.u32 [#allocation2], 4
      %s21 = int_to_ptr.vmem [resolvable:$true] %s20
      %26 = dma.hbm_to_vmem [thread:$0]  %s0, 256, %s21, [#allocation3], 128, 128, 8
    $region5: #{tpu_custom_call.1} parent=1 // pred_fallthru
      _
    // Predicated region
    $region6: #{tpu_custom_call.1} parent=1 // pred_check
      _
    $region7: #{tpu_custom_call.1} parent=1 // pred_check_branch
      %28 = sbr.rel (0) target = $region9
    $region8: #{tpu_custom_call.1} parent=1 // pred_region
      _
    $region9: #{tpu_custom_call.1} parent=1 // pred_fallthru
      _
    // Predicated region
    $region10: #{tpu_custom_call.1} parent=1 // pred_check
      _
    $region11: #{tpu_custom_call.1} parent=1 // pred_check_branch
      %30 = sbr.rel (0) target = $region13
    $region12: #{tpu_custom_call.1} parent=1 // pred_region
      _
    $region13: #{tpu_custom_call.1} parent=1 // pred_fallthru
      _
    // Predicated region
    $region14: #{tpu_custom_call.1} parent=1 // pred_check
      _
    $region15: #{tpu_custom_call.1} parent=1 // pred_check_branch
      %32 = sbr.rel (0) target = $region17
    $region16: #{tpu_custom_call.1} parent=1 // pred_region
      %33 = dma.done [#allocation3], 256
    $region17: #{tpu_custom_call.1} parent=1 // pred_fallthru
      _
    %v36 = vld [vmem:[#allocation2] sm:$0xff]
    %v37 = vld [vmem:[#allocation2 + $0x8] sm:$0xff]
    %v38 = vld [vmem:[%s1] sm:$0xff]
    %v39 = vld [vmem:[%s2] sm:$0xff]
    %41 = vset.pattern.permute.xlu0 0
    %42 = vperm.xlu0 %41, %v39
    %v43 = vpop.permute.xlu0 %42
    %vm45 = vcmask 261120
    %v47 = vsel %vm45, %v38, 0
    %v50 = vsel %vm45, %v36, 0
    %v53 = vsel %vm45, %v37, 0
    %55 = vmatprep.subr.mxu0 0.0
    %56 = vmatpush1.xpose.msra.mxu0 %v50
    %57 = vmatprep.subr.mxu0 0.0
    %58 = vmatpush1.xpose.msra.mxu0 %v53
    %59 = vmatprep.subr.mxu0 0.0
    %60 = vmatpush1.xpose.msra.mxu0 0.0
    %61 = vmatprep.subr.mxu0 0.0
    %62 = vmatpush1.xpose.msra.mxu0 0.0
    %63 = vmatprep.subr.mxu0 0.0
    %64 = vmatpush1.xpose.msra.mxu0 0.0
    %65 = vmatprep.subr.mxu0 0.0
    %66 = vmatpush1.xpose.msra.mxu0 0.0
    %67 = vmatprep.subr.mxu0 0.0
    %68 = vmatpush1.xpose.msra.mxu0 0.0
    %69 = vmatprep.subr.mxu0 0.0
    %70 = vmatpush1.xpose.msra.mxu0 0.0
    %71 = vmatprep.subr.mxu0 0.0
    %72 = vmatpush1.xpose.msra.mxu0 0.0
    %73 = vmatprep.subr.mxu0 0.0
    %74 = vmatpush1.xpose.msra.mxu0 0.0
    %75 = vmatprep.subr.mxu0 0.0
    %76 = vmatpush1.xpose.msra.mxu0 0.0
    %77 = vmatprep.subr.mxu0 0.0
    %78 = vmatpush1.xpose.msra.mxu0 0.0
    %79 = vmatprep.subr.mxu0 0.0
    %80 = vmatpush1.xpose.msra.mxu0 0.0
    %81 = vmatprep.subr.mxu0 0.0
    %82 = vmatpush1.xpose.msra.mxu0 0.0
    %83 = vmatprep.subr.mxu0 0.0
    %84 = vmatpush1.xpose.msra.mxu0 0.0
    %85 = vmatprep.subr.mxu0 0.0
    %86 = vmatpush1.xpose.msra.mxu0 0.0
    %87 = vmatprep.subr.mxu0 0.0
    %88 = vmatpush1.xpose.msra.mxu0 0.0
    %89 = vmatprep.subr.mxu0 0.0
    %90 = vmatpush1.xpose.msra.mxu0 0.0
    %91 = vmatprep.subr.mxu0 0.0
    %92 = vmatpush1.xpose.msra.mxu0 0.0
    %93 = vmatprep.subr.mxu0 0.0
    %94 = vmatpush1.xpose.msra.mxu0 0.0
    %95 = vmatprep.subr.mxu0 0.0
    %96 = vmatpush1.xpose.msra.mxu0 0.0
    %97 = vmatprep.subr.mxu0 0.0
    %98 = vmatpush1.xpose.msra.mxu0 0.0
    %99 = vmatprep.subr.mxu0 0.0
    %100 = vmatpush1.xpose.msra.mxu0 0.0
    %101 = vmatprep.subr.mxu0 0.0
    %102 = vmatpush1.xpose.msra.mxu0 0.0
    %103 = vmatprep.subr.mxu0 0.0
    %104 = vmatpush1.xpose.msra.mxu0 0.0
    %105 = vmatprep.subr.mxu0 0.0
    %106 = vmatpush1.xpose.msra.mxu0 0.0
    %107 = vmatprep.subr.mxu0 0.0
    %108 = vmatpush1.xpose.msra.mxu0 0.0
    %109 = vmatprep.subr.mxu0 0.0
    %110 = vmatpush1.xpose.msra.mxu0 0.0
    %111 = vmatprep.subr.mxu0 0.0
    %112 = vmatpush1.xpose.msra.mxu0 0.0
    %113 = vmatprep.subr.mxu0 0.0
    %114 = vmatpush1.xpose.msra.mxu0 0.0
    %115 = vmatprep.subr.mxu0 0.0
    %116 = vmatpush1.xpose.msra.mxu0 0.0
    %117 = vmatprep.subr.mxu0 0.0
    %118 = vmatpush1.xpose.msra.mxu0 0.0
    %119 = vmatprep.mubr.f32.mxu0 0.0
    %120 = vmatmul.mubr.f32.gmra.mrb[0].mxu0 %v47
    %v121 = vpop.f32.mrb[0].mxu0
    %v122 = vadd.f32 %v43, %v121
    %v123 = vpop.f32.mrb[0].mxu0
    %124 = vdwg.mxu0
    %vm125 = vcmask 130048
    %126 = vst.msk [vmem:[#allocation5] sm:$0xff] %vm125, %v122
    %v127 = vlaneseq
    %v128 = vshrl.u32 %v127, 7
    %v129 = vsel %vm125, %v122, -inf
    %v130 = vrot.slane %v129, 4
    %v131 = vmax.f32 %v129, %v130
    %v132 = vrot.slane %v131, 2
    %v133 = vmax.f32 %v131, %v132
    %v134 = vrot.slane %v133, 1
    %v135 = vmax.f32 %v133, %v134
    %vm136 = vcmp.eq.f32.partialorder %v122, %v135
    %v137 = vsel %vm136, %v128, 8
    %v138 = vsel %vm125, %v137, 2147483647
    %v139 = vrot.slane %v138, 4
    %vm140 = vcmp.lt.s32.totalorder %v138, %v139
    %v141 = vsel %vm140, %v138, %v139
    %v142 = vrot.slane %v141, 2
    %vm143 = vcmp.lt.s32.totalorder %v141, %v142
    %v144 = vsel %vm143, %v141, %v142
    %v145 = vrot.slane %v144, 1
    %vm146 = vcmp.lt.s32.totalorder %v144, %v145
    %v147 = vsel %vm146, %v144, %v145
    %vm148 = vcmp.eq.s32.totalorder %v128, %v147
    %v149 = vsel %vm148, -inf, %v122
    %v150 = vsel %vm125, %v149, -inf
    %v151 = vrot.slane %v150, 4
    %v152 = vmax.f32 %v150, %v151
    %v153 = vrot.slane %v152, 2
    %v154 = vmax.f32 %v152, %v153
    %v155 = vrot.slane %v154, 1
    %v156 = vmax.f32 %v154, %v155
    %vm157 = vcmp.eq.f32.partialorder %v149, %v156
    %v158 = vsel %vm157, %v128, 8
    %v159 = vsel %vm125, %v158, 2147483647
    %v160 = vrot.slane %v159, 4
    %vm161 = vcmp.lt.s32.totalorder %v159, %v160
    %v162 = vsel %vm161, %v159, %v160
    %v163 = vrot.slane %v162, 2
    %vm164 = vcmp.lt.s32.totalorder %v162, %v163
    %v165 = vsel %vm164, %v162, %v163
    %v166 = vrot.slane %v165, 1
    %vm167 = vcmp.lt.s32.totalorder %v165, %v166
    %v168 = vsel %vm167, %v165, %v166
    %vm169 = vcmask 1040384
    %v170 = vsel %vm169, %v135, %v156
    %v171 = vsel %vm169, %v147, %v168
    %v172 = vlaneseq
    %v173 = vshrl.u32 %v172, 7
    %v174 = vsub.s32 0, %v173
    %v175 = vrot.slane %v170, %v174
    %v176 = vsub.f32 %v170, %v175
    %v177 = vmul.f32 %v176, 1.442695
    %v178 = vpow.pop %v177
    %vm179 = vcmask 123904
    %v180 = vsel %vm179, %v178, 0.0
    %v181 = vrot.slane %v180, 4
    %v182 = vadd.f32 %v180, %v181
    %v183 = vrot.slane %v182, 2
    %v184 = vadd.f32 %v182, %v183
    %v185 = vrot.slane %v184, 1
    %v186 = vadd.f32 %v184, %v185
    %v187 = vrcp.pop %v186
    %v188 = vmul.f32 %v178, %v187
    %189 = vst.msk [vmem:[#allocation6] sm:$0x3] %vm179, %v188
    %190 = vst.msk [vmem:[#allocation8] sm:$0x3] %vm179, %v171
    %vm191 = vcmp.eq.s32.totalorder %v171, 0
    %vm192 = vcmp.eq.s32.totalorder %v171, 1
    %vm193 = vcmp.eq.s32.totalorder %v171, 2
    %vm194 = vcmp.eq.s32.totalorder %v171, 3
    %vm195 = vcmp.eq.s32.totalorder %v171, 4
    %vm196 = vcmp.eq.s32.totalorder %v171, 5
    %vm197 = vcmp.eq.s32.totalorder %v171, 6
    %vm198 = vcmp.eq.s32.totalorder %v171, 7
    %vm199 = vmpackc.low %vm191, %vm191
    %vm200 = vmpackc.even %vm199, %vm199
    %vm201 = vmpackc.low %vm192, %vm192
    %vm202 = vmpackc.even %vm201, %vm201
    %vm203 = vmpackc.low %vm193, %vm193
    %vm204 = vmpackc.even %vm203, %vm203
    %vm205 = vmpackc.low %vm194, %vm194
    %vm206 = vmpackc.even %vm205, %vm205
    %vm207 = vmpackc.low %vm195, %vm195
    %vm208 = vmpackc.even %vm207, %vm207
    %vm209 = vmpackc.low %vm196, %vm196
    %vm210 = vmpackc.even %vm209, %vm209
    %vm211 = vmpackc.low %vm197, %vm197
    %vm212 = vmpackc.even %vm211, %vm211
    %vm213 = vmpackc.low %vm198, %vm198
    %vm214 = vmpackc.even %vm213, %vm213
    %v215 = vsel %vm200, 16843009, 0
    %v216 = vsel %vm202, 16843009, 0
    %v217 = vsel %vm204, 16843009, 0
    %v218 = vsel %vm206, 16843009, 0
    %v219 = vsel %vm208, 16843009, 0
    %v220 = vsel %vm210, 16843009, 0
    %v221 = vsel %vm212, 16843009, 0
    %v222 = vsel %vm214, 16843009, 0
    %vm223 = vcmask 122880
    %vm224 = vsmask.f32 256
    %vm225 = vmand %vm223, %vm224
    %v226 = vld [vmem:[%s6] sm:$0x1]
    %v227 = vsel %vm225, %v215, %v226
    %228 = vst [vmem:[%s6] sm:$0x1] %v227
    %v229 = vld [vmem:[%s6 + $0x1] sm:$0x1]
    %v230 = vsel %vm225, %v216, %v229
    %231 = vst [vmem:[%s6 + $0x1] sm:$0x1] %v230
    %v232 = vld [vmem:[%s6 + $0x2] sm:$0x1]
    %v233 = vsel %vm225, %v217, %v232
    %234 = vst [vmem:[%s6 + $0x2] sm:$0x1] %v233
    %v235 = vld [vmem:[%s6 + $0x3] sm:$0x1]
    %v236 = vsel %vm225, %v218, %v235
    %237 = vst [vmem:[%s6 + $0x3] sm:$0x1] %v236
    %v238 = vld [vmem:[%s6 + $0x4] sm:$0x1]
    %v239 = vsel %vm225, %v219, %v238
    %240 = vst [vmem:[%s6 + $0x4] sm:$0x1] %v239
    %v241 = vld [vmem:[%s6 + $0x5] sm:$0x1]
    %v242 = vsel %vm225, %v220, %v241
    %243 = vst [vmem:[%s6 + $0x5] sm:$0x1] %v242
    %v244 = vld [vmem:[%s6 + $0x6] sm:$0x1]
    %v245 = vsel %vm225, %v221, %v244
    %246 = vst [vmem:[%s6 + $0x6] sm:$0x1] %v245
    %v247 = vld [vmem:[%s6 + $0x7] sm:$0x1]
    %v248 = vsel %vm225, %v222, %v247
    %249 = vst [vmem:[%s6 + $0x7] sm:$0x1] %v248
    // Predicated region
    $region18: #{tpu_custom_call.1} parent=1 // pred_check
      _
    $region19: #{tpu_custom_call.1} parent=1 // pred_check_branch
      %251 = sbr.rel (0) target = $region21
    $region20: #{tpu_custom_call.1} parent=1 // pred_region
      %s253 = ssub.s32 128, 128
      %254 = vsyncadd [#allocation4], %s253
      %s256 = sshll.u32 [#allocation5], 4
      %s257 = int_to_ptr.vmem [resolvable:$true] %s256
      %259 = dma.vmem_to_hbm [thread:$0]  %s257, 128, %s3, [#allocation4]
    $region21: #{tpu_custom_call.1} parent=1 // pred_fallthru
      _
    // Predicated region
    $region22: #{tpu_custom_call.1} parent=1 // pred_check
      _
    $region23: #{tpu_custom_call.1} parent=1 // pred_check_branch
      %261 = sbr.rel (0) target = $region25
    $region24: #{tpu_custom_call.1} parent=1 // pred_region
      %s263 = ssub.s32 32, 32
      %264 = vsyncadd [#allocation7], %s263
      %s266 = sshll.u32 [#allocation6], 4
      %s267 = int_to_ptr.vmem [resolvable:$true] %s266
      %269 = dma.vmem_to_hbm [thread:$0]  %s267, 32, %s4, [#allocation7]
    $region25: #{tpu_custom_call.1} parent=1 // pred_fallthru
      _
    // Predicated region
    $region26: #{tpu_custom_call.1} parent=1 // pred_check
      _
    $region27: #{tpu_custom_call.1} parent=1 // pred_check_branch
      %271 = sbr.rel (0) target = $region29
    $region28: #{tpu_custom_call.1} parent=1 // pred_region
      %s273 = ssub.s32 32, 32
      %274 = vsyncadd [#allocation7], %s273
      %s276 = sshll.u32 [#allocation8], 4
      %s277 = int_to_ptr.vmem [resolvable:$true] %s276
      %279 = dma.vmem_to_hbm [thread:$0]  %s277, 32, %s5, [#allocation7]
    $region29: #{tpu_custom_call.1} parent=1 // pred_fallthru
      _
    // Predicated region
    $region30: #{tpu_custom_call.1} parent=1 // pred_check
      _
    $region31: #{tpu_custom_call.1} parent=1 // pred_check_branch
      %281 = sbr.rel (0) target = $region33
    $region32: #{tpu_custom_call.1} parent=1 // pred_region
      _
    $region33: #{tpu_custom_call.1} parent=1 // pred_fallthru
      _
    // Predicated region
    $region34: #{tpu_custom_call.1} parent=1 // pred_check
      _
    $region35: #{tpu_custom_call.1} parent=1 // pred_check_branch
      %283 = sbr.rel (0) target = $region37
    $region36: #{tpu_custom_call.1} parent=1 // pred_region
      %284 = dma.done [#allocation4], 128
    $region37: #{tpu_custom_call.1} parent=1 // pred_fallthru
      _
    // Predicated region
    $region38: #{tpu_custom_call.1} parent=1 // pred_check
      _
    $region39: #{tpu_custom_call.1} parent=1 // pred_check_branch
      %286 = sbr.rel (0) target = $region41
    $region40: #{tpu_custom_call.1} parent=1 // pred_region
      %287 = dma.done [#allocation7], 32
    $region41: #{tpu_custom_call.1} parent=1 // pred_fallthru
      _
    // Predicated region
    $region42: #{tpu_custom_call.1} parent=1 // pred_check
      _
    $region43: #{tpu_custom_call.1} parent=1 // pred_check_branch
      %289 = sbr.rel (0) target = $region45
    $region44: #{tpu_custom_call.1} parent=1 // pred_region
      %290 = dma.done [#allocation7], 32
    $region45: #{tpu_custom_call.1} parent=1 // pred_fallthru
      _
    // Predicated region
    $region46: #{tpu_custom_call.1} parent=1 // pred_check
      _
    $region47: #{tpu_custom_call.1} parent=1 // pred_check_branch
      %292 = sbr.rel (0) target = $region49
    $region48: #{tpu_custom_call.1} parent=1 // pred_region
      _
    $region49: #{tpu_custom_call.1} parent=1 // pred_fallthru
      _
    %293 = vsyncpa [#allocation3], 1
    %294 = vsyncpa [#allocation4], 1
    %295 = vsyncpa [#allocation7], 1

</llo_original>
